<compile_context>
chip_gen: v5e
topology: v5e:2x2
jax: 0.10.0
libtpu: 0.0.40
codegen_flags: <defaults>
</compile_context>

<pallas_src>
import jax
import jax.numpy as jnp
from jax.experimental import pallas as pl
from jax.experimental.pallas import tpu as pltpu


def _make_kernel(patch_len, wp):
    """Kernel body: one batch element per grid step.

    x_ref : (1, C, FLAT)        bf16 padded input, flattened over (H+3, W+2)
    w_ref : (16, C, C)          bf16 dense tap weights, [ (rh*2+rw)*4 + da*2+db ] -> (Cout, Cin)
    b_ref : (4, C, 1)           f32 bias per phase
    o_ref : (1, 4, C, PATCH)    4 phase planes, spatial flattened over (H, W+2)
    """
    phases = tuple((rh, rw) for rh in range(2) for rw in range(2))
    taps = tuple((da, db) for da in range(2) for db in range(2))

    def kernel(x_ref, w_ref, b_ref, o_ref):
        x = x_ref[0]                                             # (C, FLAT) bf16
        for ph, (rh, rw) in enumerate(phases):
            acc = None
            for ti, (da, db) in enumerate(taps):
                off = (rh + da) * wp + (rw + db)                 # contiguous lane slice
                xs = x[:, off:off + patch_len]                   # (C, PATCH) bf16
                contrib = jnp.dot(w_ref[ph * 4 + ti], xs,
                                  preferred_element_type=jnp.float32)
                acc = contrib if acc is None else acc + contrib  # f32 accumulate, no scratch
            acc = acc + b_ref[ph]                                # (C,1) bias, lane broadcast
            o_ref[0, ph] = acc.astype(o_ref.dtype)

    return kernel


def upsample_forward(x_nchw, t, weight_pt, bias):
    """Forward of Upsample: ConvTranspose2d(C, C, 4, stride=2, padding=1).

    x_nchw: (N, C, H, W); weight_pt: (Cin, Cout, 4, 4) (PyTorch ConvTranspose2d layout);
    bias: (Cout,).  Returns (N, C, 2H, 2W).  `t` is ignored (as in the PyTorch module)."""
    del t
    N, C, H, W = x_nchw.shape
    OH, OW = 2 * H, 2 * W
    Wp = W + 2                       # padded row width (1 px halo each side)
    PATCH = H * Wp                   # flattened spatial extent per phase (incl. 2 junk cols/row)
    FLAT = (H + 3) * Wp              # padded+flattened input (extra bottom row keeps every
                                     #   shifted window slice in-bounds)
    dt = x_nchw.dtype

    # ---- wrapper prep: halo pad, flatten spatial onto lanes, cast operands to bf16 --------
    xp = jnp.pad(x_nchw, ((0, 0), (0, 0), (1, 2), (1, 1)))       # (N, C, H+3, W+2)
    x_flat = xp.reshape(N, C, FLAT).astype(jnp.bfloat16)         # contiguous -> free reshape

    # Dense per-phase tap weights:
    #   phase (rh, rw), tap (da, db):  kh = 3 - rh - 2*da, kw = 3 - rw - 2*db,
    #   operand = weight[:, :, kh, kw].T  (Cout, Cin); window offset = (rh+da)*Wp + (rw+db).
    mats = []
    for rh in range(2):
        for rw in range(2):
            for da in range(2):
                for db in range(2):
                    kh = 3 - rh - 2 * da
                    kw = 3 - rw - 2 * db
                    mats.append(weight_pt[:, :, kh, kw].T)
    w_all = jnp.stack(mats, axis=0).astype(jnp.bfloat16)         # (16, C, C), no zero blocks
    b_all = jnp.tile(bias.astype(jnp.float32), 4).reshape(4, C, 1)

    kernel = _make_kernel(PATCH, Wp)

    out_ph = pl.pallas_call(
        kernel,
        out_shape=jax.ShapeDtypeStruct((N, 4, C, PATCH), dt),
        grid=(N,),
        in_specs=[
            pl.BlockSpec((1, C, FLAT), lambda n: (n, 0, 0)),
            pl.BlockSpec((16, C, C), lambda n: (0, 0, 0)),
            pl.BlockSpec((4, C, 1), lambda n: (0, 0, 0)),
        ],
        out_specs=pl.BlockSpec((1, 4, C, PATCH), lambda n: (n, 0, 0, 0)),
        compiler_params=pltpu.CompilerParams(
            dimension_semantics=("parallel",),
            vmem_limit_bytes=32 * 1024 * 1024),
    )(x_flat, w_all, b_all)

    # Pixel shuffle (single XLA epilogue): interleave the 4 phase planes, drop the 2 junk
    # columns per row.  See TODO(synk) above for folding this into the kernel.
    y = out_ph.reshape(N, 2, 2, C, H, Wp)[..., :W]               # (N, rh, rw, C, H, W)
    y = jnp.transpose(y, (0, 3, 4, 1, 5, 2))                     # (N, C, H, rh, W, rw)
    return y.reshape(N, C, OH, OW)


def _reference_conv_transpose(x, weight_pt, bias):
    """Independent pure-JAX reference implementing PyTorch ConvTranspose2d(k=4, s=2, p=1)
    via explicit scatter of each kernel tap."""
    N, Cin, H, W = x.shape
    _, Cout, K, _ = weight_pt.shape
    OH, OW = 2 * H, 2 * W
    out = jnp.zeros((N, Cout, OH + 2, OW + 2), jnp.float32)      # +1 pad each side, cropped below
    for kh in range(K):
        for kw in range(K):
            contrib = jnp.einsum("nihw,io->nohw", x, weight_pt[:, :, kh, kw])
            out = out.at[:, :, kh:kh + 2 * H:2, kw:kw + 2 * W:2].add(contrib)
    return out[:, :, 1:1 + OH, 1:1 + OW] + bias[None, :, None, None]


if __name__ == "__main__":
    # Small, deterministic setup: batch=2, channels=8, spatial=16.
    N, C, H, W = 2, 8, 16, 16
    key = jax.random.PRNGKey(0)
    kx, kt, kw_, kb = jax.random.split(key, 4)

    x = jax.random.normal(kx, (N, C, H, W), dtype=jnp.float32)
    t = jax.random.normal(kt, (N,), dtype=jnp.float32)           # unused by forward, as in PyTorch

    # Deterministic parameter init (ConvTranspose2d weight: (in, out, 4, 4), bias: (out,)).
    bound = 1.0 / (C * 4 * 4) ** 0.5
    weight = jax.random.uniform(kw_, (C, C, 4, 4), jnp.float32, -bound, bound)
    bias = jax.random.uniform(kb, (C,), jnp.float32, -bound, bound)

    out = upsample_forward(x, t, weight, bias)
    out = jax.block_until_ready(out)
    assert out.shape == (N, C, 2 * H, 2 * W), out.shape

    # Tight check: reference computed from the SAME bf16-rounded operands the kernel uses
    # (bf16 x bf16 products are exact in f32, so only accumulation order differs).
    x_r = x.astype(jnp.bfloat16).astype(jnp.float32)
    w_r = weight.astype(jnp.bfloat16).astype(jnp.float32)
    ref_exact = _reference_conv_transpose(x_r, w_r, bias)
    assert jnp.allclose(out, ref_exact, atol=1e-4, rtol=1e-4), \
        float(jnp.max(jnp.abs(out - ref_exact)))

    # Loose sanity check against the full-f32 reference (bounds the bf16 operand rounding).
    ref_f32 = _reference_conv_transpose(x, weight, bias)
    assert jnp.allclose(out, ref_f32, atol=5e-2, rtol=5e-2), \
        float(jnp.max(jnp.abs(out - ref_f32)))

    print("KERNEL_OK")
</pallas_src>

<mosaic_0001>
module attributes {stable_mosaic.version = 11 : i64} {
  func.func @kernel(%arg0: i32, %arg1: memref<1x8x342xbf16, #tpu.memory_space<vmem>>, %arg2: memref<16x8x8xbf16, #tpu.memory_space<vmem>>, %arg3: memref<4x8x1xf32, #tpu.memory_space<vmem>>, %arg4: memref<1x4x8x288xf32, #tpu.memory_space<vmem>>) attributes {dimension_semantics = [#tpu.dimension_semantics<parallel>], iteration_bounds = array<i64: 2>, scalar_prefetch = 0 : i64, scratch_operands = 0 : i64, tpu.core_type = #tpu.core_type<tc>, window_params = [{transform_indices = @transform_0, window_bounds = array<i64: 1, 8, 342>}, {pipeline_mode = #tpu.pipeline_mode<synchronous>, transform_indices = @transform_1, window_bounds = array<i64: 16, 8, 8>}, {pipeline_mode = #tpu.pipeline_mode<synchronous>, transform_indices = @transform_2, window_bounds = array<i64: 4, 8, 1>}, {transform_indices = @transform_3, window_bounds = array<i64: 1, 4, 8, 288>}]} {
    %c0 = arith.constant 0 : index
    %c0_0 = arith.constant 0 : index
    %c0_1 = arith.constant 0 : index
    %0 = vector.load %arg1[%c0, %c0_0, %c0_1] : memref<1x8x342xbf16, #tpu.memory_space<vmem>>, vector<1x8x342xbf16>
    %1 = vector.shape_cast %0 : vector<1x8x342xbf16> to vector<8x342xbf16>
    %2 = vector.extract_strided_slice %1 {offsets = [0, 0], sizes = [8, 288], strides = [1, 1]} : vector<8x342xbf16> to vector<8x288xbf16>
    %c0_2 = arith.constant 0 : index
    %c0_3 = arith.constant 0 : index
    %c0_4 = arith.constant 0 : index
    %3 = vector.load %arg2[%c0_2, %c0_3, %c0_4] : memref<16x8x8xbf16, #tpu.memory_space<vmem>>, vector<1x8x8xbf16>
    %4 = vector.shape_cast %3 : vector<1x8x8xbf16> to vector<8x8xbf16>
    %cst = arith.constant dense<0.000000e+00> : vector<8x288xf32>
    %5 = tpu.matmul %4, %2, %cst {dimension_numbers = #tpu.dot_dimension_numbers<[1], [0], [0], [1], [0, 0, 1, 1], [], []>} : vector<8x8xbf16>, vector<8x288xbf16>, vector<8x288xf32> -> vector<8x288xf32>
    %6 = vector.extract_strided_slice %1 {offsets = [0, 1], sizes = [8, 288], strides = [1, 1]} : vector<8x342xbf16> to vector<8x288xbf16>
    %c1 = arith.constant 1 : index
    %c0_5 = arith.constant 0 : index
    %c0_6 = arith.constant 0 : index
    %7 = vector.load %arg2[%c1, %c0_5, %c0_6] : memref<16x8x8xbf16, #tpu.memory_space<vmem>>, vector<1x8x8xbf16>
    %8 = vector.shape_cast %7 : vector<1x8x8xbf16> to vector<8x8xbf16>
    %cst_7 = arith.constant dense<0.000000e+00> : vector<8x288xf32>
    %9 = tpu.matmul %8, %6, %cst_7 {dimension_numbers = #tpu.dot_dimension_numbers<[1], [0], [0], [1], [0, 0, 1, 1], [], []>} : vector<8x8xbf16>, vector<8x288xbf16>, vector<8x288xf32> -> vector<8x288xf32>
    %10 = arith.addf %5, %9 : vector<8x288xf32>
    %11 = vector.extract_strided_slice %1 {offsets = [0, 18], sizes = [8, 288], strides = [1, 1]} : vector<8x342xbf16> to vector<8x288xbf16>
    %c2 = arith.constant 2 : index
    %c0_8 = arith.constant 0 : index
    %c0_9 = arith.constant 0 : index
    %12 = vector.load %arg2[%c2, %c0_8, %c0_9] : memref<16x8x8xbf16, #tpu.memory_space<vmem>>, vector<1x8x8xbf16>
    %13 = vector.shape_cast %12 : vector<1x8x8xbf16> to vector<8x8xbf16>
    %cst_10 = arith.constant dense<0.000000e+00> : vector<8x288xf32>
    %14 = tpu.matmul %13, %11, %cst_10 {dimension_numbers = #tpu.dot_dimension_numbers<[1], [0], [0], [1], [0, 0, 1, 1], [], []>} : vector<8x8xbf16>, vector<8x288xbf16>, vector<8x288xf32> -> vector<8x288xf32>
    %15 = arith.addf %10, %14 : vector<8x288xf32>
    %16 = vector.extract_strided_slice %1 {offsets = [0, 19], sizes = [8, 288], strides = [1, 1]} : vector<8x342xbf16> to vector<8x288xbf16>
    %c3 = arith.constant 3 : index
    %c0_11 = arith.constant 0 : index
    %c0_12 = arith.constant 0 : index
    %17 = vector.load %arg2[%c3, %c0_11, %c0_12] : memref<16x8x8xbf16, #tpu.memory_space<vmem>>, vector<1x8x8xbf16>
    %18 = vector.shape_cast %17 : vector<1x8x8xbf16> to vector<8x8xbf16>
    %cst_13 = arith.constant dense<0.000000e+00> : vector<8x288xf32>
    %19 = tpu.matmul %18, %16, %cst_13 {dimension_numbers = #tpu.dot_dimension_numbers<[1], [0], [0], [1], [0, 0, 1, 1], [], []>} : vector<8x8xbf16>, vector<8x288xbf16>, vector<8x288xf32> -> vector<8x288xf32>
    %20 = arith.addf %15, %19 : vector<8x288xf32>
    %c0_14 = arith.constant 0 : index
    %c0_15 = arith.constant 0 : index
    %c0_16 = arith.constant 0 : index
    %21 = vector.load %arg3[%c0_14, %c0_15, %c0_16] : memref<4x8x1xf32, #tpu.memory_space<vmem>>, vector<1x8x1xf32>
    %22 = vector.shape_cast %21 : vector<1x8x1xf32> to vector<8x1xf32>
    %23 = vector.broadcast %22 : vector<8x1xf32> to vector<8x288xf32>
    %24 = arith.addf %20, %23 : vector<8x288xf32>
    %c0_17 = arith.constant 0 : index
    %c0_18 = arith.constant 0 : index
    %c0_19 = arith.constant 0 : index
    %c0_20 = arith.constant 0 : index
    %25 = vector.load %arg4[%c0_17, %c0_18, %c0_19, %c0_20] : memref<1x4x8x288xf32, #tpu.memory_space<vmem>>, vector<1x1x8x288xf32>
    %26 = vector.shape_cast %25 : vector<1x1x8x288xf32> to vector<8x288xf32>
    %27 = vector.shape_cast %24 : vector<8x288xf32> to vector<1x1x8x288xf32>
    tpu.vector_store %arg4[%c0_17, %c0_18, %c0_19, %c0_20], %27 {strides = array<i32>} : memref<1x4x8x288xf32, #tpu.memory_space<vmem>>, vector<1x1x8x288xf32>,
    %28 = vector.extract_strided_slice %1 {offsets = [0, 1], sizes = [8, 288], strides = [1, 1]} : vector<8x342xbf16> to vector<8x288xbf16>
    %c4 = arith.constant 4 : index
    %c0_21 = arith.constant 0 : index
    %c0_22 = arith.constant 0 : index
    %29 = vector.load %arg2[%c4, %c0_21, %c0_22] : memref<16x8x8xbf16, #tpu.memory_space<vmem>>, vector<1x8x8xbf16>
    %30 = vector.shape_cast %29 : vector<1x8x8xbf16> to vector<8x8xbf16>
    %cst_23 = arith.constant dense<0.000000e+00> : vector<8x288xf32>
    %31 = tpu.matmul %30, %28, %cst_23 {dimension_numbers = #tpu.dot_dimension_numbers<[1], [0], [0], [1], [0, 0, 1, 1], [], []>} : vector<8x8xbf16>, vector<8x288xbf16>, vector<8x288xf32> -> vector<8x288xf32>
    %32 = vector.extract_strided_slice %1 {offsets = [0, 2], sizes = [8, 288], strides = [1, 1]} : vector<8x342xbf16> to vector<8x288xbf16>
    %c5 = arith.constant 5 : index
    %c0_24 = arith.constant 0 : index
    %c0_25 = arith.constant 0 : index
    %33 = vector.load %arg2[%c5, %c0_24, %c0_25] : memref<16x8x8xbf16, #tpu.memory_space<vmem>>, vector<1x8x8xbf16>
    %34 = vector.shape_cast %33 : vector<1x8x8xbf16> to vector<8x8xbf16>
    %cst_26 = arith.constant dense<0.000000e+00> : vector<8x288xf32>
    %35 = tpu.matmul %34, %32, %cst_26 {dimension_numbers = #tpu.dot_dimension_numbers<[1], [0], [0], [1], [0, 0, 1, 1], [], []>} : vector<8x8xbf16>, vector<8x288xbf16>, vector<8x288xf32> -> vector<8x288xf32>
    %36 = arith.addf %31, %35 : vector<8x288xf32>
    %37 = vector.extract_strided_slice %1 {offsets = [0, 19], sizes = [8, 288], strides = [1, 1]} : vector<8x342xbf16> to vector<8x288xbf16>
    %c6 = arith.constant 6 : index
    %c0_27 = arith.constant 0 : index
    %c0_28 = arith.constant 0 : index
    %38 = vector.load %arg2[%c6, %c0_27, %c0_28] : memref<16x8x8xbf16, #tpu.memory_space<vmem>>, vector<1x8x8xbf16>
    %39 = vector.shape_cast %38 : vector<1x8x8xbf16> to vector<8x8xbf16>
    %cst_29 = arith.constant dense<0.000000e+00> : vector<8x288xf32>
    %40 = tpu.matmul %39, %37, %cst_29 {dimension_numbers = #tpu.dot_dimension_numbers<[1], [0], [0], [1], [0, 0, 1, 1], [], []>} : vector<8x8xbf16>, vector<8x288xbf16>, vector<8x288xf32> -> vector<8x288xf32>
    %41 = arith.addf %36, %40 : vector<8x288xf32>
    %42 = vector.extract_strided_slice %1 {offsets = [0, 20], sizes = [8, 288], strides = [1, 1]} : vector<8x342xbf16> to vector<8x288xbf16>
    %c7 = arith.constant 7 : index
    %c0_30 = arith.constant 0 : index
    %c0_31 = arith.constant 0 : index
    %43 = vector.load %arg2[%c7, %c0_30, %c0_31] : memref<16x8x8xbf16, #tpu.memory_space<vmem>>, vector<1x8x8xbf16>
    %44 = vector.shape_cast %43 : vector<1x8x8xbf16> to vector<8x8xbf16>
    %cst_32 = arith.constant dense<0.000000e+00> : vector<8x288xf32>
    %45 = tpu.matmul %44, %42, %cst_32 {dimension_numbers = #tpu.dot_dimension_numbers<[1], [0], [0], [1], [0, 0, 1, 1], [], []>} : vector<8x8xbf16>, vector<8x288xbf16>, vector<8x288xf32> -> vector<8x288xf32>
    %46 = arith.addf %41, %45 : vector<8x288xf32>
    %c1_33 = arith.constant 1 : index
    %c0_34 = arith.constant 0 : index
    %c0_35 = arith.constant 0 : index
    %47 = vector.load %arg3[%c1_33, %c0_34, %c0_35] : memref<4x8x1xf32, #tpu.memory_space<vmem>>, vector<1x8x1xf32>
    %48 = vector.shape_cast %47 : vector<1x8x1xf32> to vector<8x1xf32>
    %49 = vector.broadcast %48 : vector<8x1xf32> to vector<8x288xf32>
    %50 = arith.addf %46, %49 : vector<8x288xf32>
    %c0_36 = arith.constant 0 : index
    %c1_37 = arith.constant 1 : index
    %c0_38 = arith.constant 0 : index
    %c0_39 = arith.constant 0 : index
    %51 = vector.load %arg4[%c0_36, %c1_37, %c0_38, %c0_39] : memref<1x4x8x288xf32, #tpu.memory_space<vmem>>, vector<1x1x8x288xf32>
    %52 = vector.shape_cast %51 : vector<1x1x8x288xf32> to vector<8x288xf32>
    %53 = vector.shape_cast %50 : vector<8x288xf32> to vector<1x1x8x288xf32>
    tpu.vector_store %arg4[%c0_36, %c1_37, %c0_38, %c0_39], %53 {strides = array<i32>} : memref<1x4x8x288xf32, #tpu.memory_space<vmem>>, vector<1x1x8x288xf32>,
    %54 = vector.extract_strided_slice %1 {offsets = [0, 18], sizes = [8, 288], strides = [1, 1]} : vector<8x342xbf16> to vector<8x288xbf16>
    %c8 = arith.constant 8 : index
    %c0_40 = arith.constant 0 : index
    %c0_41 = arith.constant 0 : index
    %55 = vector.load %arg2[%c8, %c0_40, %c0_41] : memref<16x8x8xbf16, #tpu.memory_space<vmem>>, vector<1x8x8xbf16>
    %56 = vector.shape_cast %55 : vector<1x8x8xbf16> to vector<8x8xbf16>
    %cst_42 = arith.constant dense<0.000000e+00> : vector<8x288xf32>
    %57 = tpu.matmul %56, %54, %cst_42 {dimension_numbers = #tpu.dot_dimension_numbers<[1], [0], [0], [1], [0, 0, 1, 1], [], []>} : vector<8x8xbf16>, vector<8x288xbf16>, vector<8x288xf32> -> vector<8x288xf32>
    %58 = vector.extract_strided_slice %1 {offsets = [0, 19], sizes = [8, 288], strides = [1, 1]} : vector<8x342xbf16> to vector<8x288xbf16>
    %c9 = arith.constant 9 : index
    %c0_43 = arith.constant 0 : index
    %c0_44 = arith.constant 0 : index
    %59 = vector.load %arg2[%c9, %c0_43, %c0_44] : memref<16x8x8xbf16, #tpu.memory_space<vmem>>, vector<1x8x8xbf16>
    %60 = vector.shape_cast %59 : vector<1x8x8xbf16> to vector<8x8xbf16>
    %cst_45 = arith.constant dense<0.000000e+00> : vector<8x288xf32>
    %61 = tpu.matmul %60, %58, %cst_45 {dimension_numbers = #tpu.dot_dimension_numbers<[1], [0], [0], [1], [0, 0, 1, 1], [], []>} : vector<8x8xbf16>, vector<8x288xbf16>, vector<8x288xf32> -> vector<8x288xf32>
    %62 = arith.addf %57, %61 : vector<8x288xf32>
    %63 = vector.extract_strided_slice %1 {offsets = [0, 36], sizes = [8, 288], strides = [1, 1]} : vector<8x342xbf16> to vector<8x288xbf16>
    %c10 = arith.constant 10 : index
    %c0_46 = arith.constant 0 : index
    %c0_47 = arith.constant 0 : index
    %64 = vector.load %arg2[%c10, %c0_46, %c0_47] : memref<16x8x8xbf16, #tpu.memory_space<vmem>>, vector<1x8x8xbf16>
    %65 = vector.shape_cast %64 : vector<1x8x8xbf16> to vector<8x8xbf16>
    %cst_48 = arith.constant dense<0.000000e+00> : vector<8x288xf32>
    %66 = tpu.matmul %65, %63, %cst_48 {dimension_numbers = #tpu.dot_dimension_numbers<[1], [0], [0], [1], [0, 0, 1, 1], [], []>} : vector<8x8xbf16>, vector<8x288xbf16>, vector<8x288xf32> -> vector<8x288xf32>
    %67 = arith.addf %62, %66 : vector<8x288xf32>
    %68 = vector.extract_strided_slice %1 {offsets = [0, 37], sizes = [8, 288], strides = [1, 1]} : vector<8x342xbf16> to vector<8x288xbf16>
    %c11 = arith.constant 11 : index
    %c0_49 = arith.constant 0 : index
    %c0_50 = arith.constant 0 : index
    %69 = vector.load %arg2[%c11, %c0_49, %c0_50] : memref<16x8x8xbf16, #tpu.memory_space<vmem>>, vector<1x8x8xbf16>
    %70 = vector.shape_cast %69 : vector<1x8x8xbf16> to vector<8x8xbf16>
    %cst_51 = arith.constant dense<0.000000e+00> : vector<8x288xf32>
    %71 = tpu.matmul %70, %68, %cst_51 {dimension_numbers = #tpu.dot_dimension_numbers<[1], [0], [0], [1], [0, 0, 1, 1], [], []>} : vector<8x8xbf16>, vector<8x288xbf16>, vector<8x288xf32> -> vector<8x288xf32>
    %72 = arith.addf %67, %71 : vector<8x288xf32>
    %c2_52 = arith.constant 2 : index
    %c0_53 = arith.constant 0 : index
    %c0_54 = arith.constant 0 : index
    %73 = vector.load %arg3[%c2_52, %c0_53, %c0_54] : memref<4x8x1xf32, #tpu.memory_space<vmem>>, vector<1x8x1xf32>
    %74 = vector.shape_cast %73 : vector<1x8x1xf32> to vector<8x1xf32>
    %75 = vector.broadcast %74 : vector<8x1xf32> to vector<8x288xf32>
    %76 = arith.addf %72, %75 : vector<8x288xf32>
    %c0_55 = arith.constant 0 : index
    %c2_56 = arith.constant 2 : index
    %c0_57 = arith.constant 0 : index
    %c0_58 = arith.constant 0 : index
    %77 = vector.load %arg4[%c0_55, %c2_56, %c0_57, %c0_58] : memref<1x4x8x288xf32, #tpu.memory_space<vmem>>, vector<1x1x8x288xf32>
    %78 = vector.shape_cast %77 : vector<1x1x8x288xf32> to vector<8x288xf32>
    %79 = vector.shape_cast %76 : vector<8x288xf32> to vector<1x1x8x288xf32>
    tpu.vector_store %arg4[%c0_55, %c2_56, %c0_57, %c0_58], %79 {strides = array<i32>} : memref<1x4x8x288xf32, #tpu.memory_space<vmem>>, vector<1x1x8x288xf32>,
    %80 = vector.extract_strided_slice %1 {offsets = [0, 19], sizes = [8, 288], strides = [1, 1]} : vector<8x342xbf16> to vector<8x288xbf16>
    %c12 = arith.constant 12 : index
    %c0_59 = arith.constant 0 : index
    %c0_60 = arith.constant 0 : index
    %81 = vector.load %arg2[%c12, %c0_59, %c0_60] : memref<16x8x8xbf16, #tpu.memory_space<vmem>>, vector<1x8x8xbf16>
    %82 = vector.shape_cast %81 : vector<1x8x8xbf16> to vector<8x8xbf16>
    %cst_61 = arith.constant dense<0.000000e+00> : vector<8x288xf32>
    %83 = tpu.matmul %82, %80, %cst_61 {dimension_numbers = #tpu.dot_dimension_numbers<[1], [0], [0], [1], [0, 0, 1, 1], [], []>} : vector<8x8xbf16>, vector<8x288xbf16>, vector<8x288xf32> -> vector<8x288xf32>
    %84 = vector.extract_strided_slice %1 {offsets = [0, 20], sizes = [8, 288], strides = [1, 1]} : vector<8x342xbf16> to vector<8x288xbf16>
    %c13 = arith.constant 13 : index
    %c0_62 = arith.constant 0 : index
    %c0_63 = arith.constant 0 : index
    %85 = vector.load %arg2[%c13, %c0_62, %c0_63] : memref<16x8x8xbf16, #tpu.memory_space<vmem>>, vector<1x8x8xbf16>
    %86 = vector.shape_cast %85 : vector<1x8x8xbf16> to vector<8x8xbf16>
    %cst_64 = arith.constant dense<0.000000e+00> : vector<8x288xf32>
    %87 = tpu.matmul %86, %84, %cst_64 {dimension_numbers = #tpu.dot_dimension_numbers<[1], [0], [0], [1], [0, 0, 1, 1], [], []>} : vector<8x8xbf16>, vector<8x288xbf16>, vector<8x288xf32> -> vector<8x288xf32>
    %88 = arith.addf %83, %87 : vector<8x288xf32>
    %89 = vector.extract_strided_slice %1 {offsets = [0, 37], sizes = [8, 288], strides = [1, 1]} : vector<8x342xbf16> to vector<8x288xbf16>
    %c14 = arith.constant 14 : index
    %c0_65 = arith.constant 0 : index
    %c0_66 = arith.constant 0 : index
    %90 = vector.load %arg2[%c14, %c0_65, %c0_66] : memref<16x8x8xbf16, #tpu.memory_space<vmem>>, vector<1x8x8xbf16>
    %91 = vector.shape_cast %90 : vector<1x8x8xbf16> to vector<8x8xbf16>
    %cst_67 = arith.constant dense<0.000000e+00> : vector<8x288xf32>
    %92 = tpu.matmul %91, %89, %cst_67 {dimension_numbers = #tpu.dot_dimension_numbers<[1], [0], [0], [1], [0, 0, 1, 1], [], []>} : vector<8x8xbf16>, vector<8x288xbf16>, vector<8x288xf32> -> vector<8x288xf32>
    %93 = arith.addf %88, %92 : vector<8x288xf32>
    %94 = vector.extract_strided_slice %1 {offsets = [0, 38], sizes = [8, 288], strides = [1, 1]} : vector<8x342xbf16> to vector<8x288xbf16>
    %c15 = arith.constant 15 : index
    %c0_68 = arith.constant 0 : index
    %c0_69 = arith.constant 0 : index
    %95 = vector.load %arg2[%c15, %c0_68, %c0_69] : memref<16x8x8xbf16, #tpu.memory_space<vmem>>, vector<1x8x8xbf16>
    %96 = vector.shape_cast %95 : vector<1x8x8xbf16> to vector<8x8xbf16>
    %cst_70 = arith.constant dense<0.000000e+00> : vector<8x288xf32>
    %97 = tpu.matmul %96, %94, %cst_70 {dimension_numbers = #tpu.dot_dimension_numbers<[1], [0], [0], [1], [0, 0, 1, 1], [], []>} : vector<8x8xbf16>, vector<8x288xbf16>, vector<8x288xf32> -> vector<8x288xf32>
    %98 = arith.addf %93, %97 : vector<8x288xf32>
    %c3_71 = arith.constant 3 : index
    %c0_72 = arith.constant 0 : index
    %c0_73 = arith.constant 0 : index
    %99 = vector.load %arg3[%c3_71, %c0_72, %c0_73] : memref<4x8x1xf32, #tpu.memory_space<vmem>>, vector<1x8x1xf32>
    %100 = vector.shape_cast %99 : vector<1x8x1xf32> to vector<8x1xf32>
    %101 = vector.broadcast %100 : vector<8x1xf32> to vector<8x288xf32>
    %102 = arith.addf %98, %101 : vector<8x288xf32>
    %c0_74 = arith.constant 0 : index
    %c3_75 = arith.constant 3 : index
    %c0_76 = arith.constant 0 : index
    %c0_77 = arith.constant 0 : index
    %103 = vector.load %arg4[%c0_74, %c3_75, %c0_76, %c0_77] : memref<1x4x8x288xf32, #tpu.memory_space<vmem>>, vector<1x1x8x288xf32>
    %104 = vector.shape_cast %103 : vector<1x1x8x288xf32> to vector<8x288xf32>
    %105 = vector.shape_cast %102 : vector<8x288xf32> to vector<1x1x8x288xf32>
    tpu.vector_store %arg4[%c0_74, %c3_75, %c0_76, %c0_77], %105 {strides = array<i32>} : memref<1x4x8x288xf32, #tpu.memory_space<vmem>>, vector<1x1x8x288xf32>,
    return
  }
  func.func @transform_0(%arg0: i32) -> (i32, i32, i32) {
    %c0_i32 = arith.constant 0 : i32
    %c0_i32_0 = arith.constant 0 : i32
    %c0_i32_1 = arith.constant 0 : i32
    return %arg0, %c0_i32, %c0_i32_0 : i32, i32, i32
  }
  func.func @transform_1(%arg0: i32) -> (i32, i32, i32) {
    %c0_i32 = arith.constant 0 : i32
    %c0_i32_0 = arith.constant 0 : i32
    %c0_i32_1 = arith.constant 0 : i32
    %c0_i32_2 = arith.constant 0 : i32
    return %c0_i32, %c0_i32_0, %c0_i32_1 : i32, i32, i32
  }
  func.func @transform_2(%arg0: i32) -> (i32, i32, i32) {
    %c0_i32 = arith.constant 0 : i32
    %c0_i32_0 = arith.constant 0 : i32
    %c0_i32_1 = arith.constant 0 : i32
    %c0_i32_2 = arith.constant 0 : i32
    return %c0_i32, %c0_i32_0, %c0_i32_1 : i32, i32, i32
  }
  func.func @transform_3(%arg0: i32) -> (i32, i32, i32, i32) {
    %c0_i32 = arith.constant 0 : i32
    %c0_i32_0 = arith.constant 0 : i32
    %c0_i32_1 = arith.constant 0 : i32
    %c0_i32_2 = arith.constant 0 : i32
    return %arg0, %c0_i32, %c0_i32_0, %c0_i32_1 : i32, i32, i32, i32
  }
}

</mosaic_0001>

<llo_original>
// kernel: tpu_custom_call.1
$region0: #{tpu_custom_call.1}
  #allocation0 [shape = 'u32[]', space=smem, size = 0x4, offset = 0x4, fixed_abs, tag = 'smem constant byte address 0x4 - core index']
  #allocation1 [shape = 'u32[72,128]{1,0:T(1,128)}', space=vmem, size = 0x9000, scoped, tag = 'internal scratch']
  %s0 = inlined_call_operand.vmem [shape: bf16[2,8,342], index: 0, kind: input, shape index: {}]
  %s1 = inlined_call_operand.vmem [shape: bf16[16,8,8], index: 1, kind: input, shape index: {}]
  %s2 = inlined_call_operand.vmem [shape: f32[4,8,1], index: 2, kind: input, shape index: {}]
  %s3 = inlined_call_operand.hbm [shape: f32[2,4,8,288], index: 3, kind: output, shape index: {}]
  %s4 = sld [smem:[#allocation0]]
  $region45: #{tpu_custom_call.1} parent=0
    _
  %s6 = ssub.s32 1, %s4
  %s7 = scalar_select 0, %s6, %s4
  $region1: #{tpu_custom_call.1} parent=0
    #allocation2 [shape = 'u8[98304]{0}', space=vmem, size = 0x18000, scoped, tag = 'output window, operand 0']
    #allocation3 [shape = 's32[2]{0}', space=sflag, size = 0x8, scoped, tag = 'scoped memory for tpu_custom_call.1']
    %8 = vsyncpa [#allocation3], 0
    %s9 = scalar_lea.sflag [#allocation3], 1
    %10 = vsyncpa %s9, 0
    loop: start=0, step=1, limit=4
    $region2: #{tpu_custom_call.1} parent=1 // loop_pre_header
      _
    $region3: #{tpu_custom_call.1} parent=1 // loop_header
      %s12 = sphi 0, %s16
      %p13 = scmp.ge.s32.totalorder %s12, 4
      %s22 = sphi 0, %s24
      %s25 = sphi 0, %s22
      %s26 = sphi 0, %s25
      %s42 = sphi 0, %s26
      %s46 = sphi 0, %s46
      %s48 = sphi 0, %s46
      %s49 = sphi 0, %s48
      %s63 = sphi 0, %s49
      %s67 = sphi 0, %s67
      %s69 = sphi 0, %s67
      %s70 = sphi 0, %s69
      %s84 = sphi 0, %s70
      %s90 = sphi 0, %s92
      %s93 = sphi 0, %s90
      %s94 = sphi 0, %s93
      %s110 = sphi 0, %s94
    $region4: #{tpu_custom_call.1} parent=1 // loop_header_branch
      %15 = sbr.rel (%p13) target = $region8
    $region5: #{tpu_custom_call.1} parent=1 // loop_body
      %s17 = ssub.s32 %s12, 1
      %s18 = ssub.s32 %s12, 2
      %s19 = sadd.s32 %s12, 1
      %s20 = ssub.s32 %s12, %s19
      %p21 = scmp.eq.s32.totalorder %s20, 0
      %s23 = sadd.s32 %s22, 1
      %s24 = scalar_select %p21, %s22, %s23
      %p27 = pneg %p21
      %p28 = scmp.eq.s32.totalorder %s12, 1
      %p29 = por %p27, %p28
      %p30 = scmp.ne.s32.totalorder %s22, %s25
      %p31 = scmp.eq.s32.totalorder %s12, 0
      %p32 = por %p30, %p31
      %p33 = scmp.ne.s32.totalorder %s22, %s25
      %p34 = scmp.eq.s32.totalorder %s17, 1
      %p35 = por %p33, %p34
      %p36 = scmp.ne.s32.totalorder %s25, %s26
      %p37 = scmp.eq.s32.totalorder %s17, 0
      %p38 = por %p36, %p37
      %p39 = scmp.ne.s32.totalorder %s25, %s26
      %p40 = scmp.eq.s32.totalorder %s18, 1
      %p41 = por %p39, %p40
      %p43 = scmp.ne.s32.totalorder %s26, %s42
      %p44 = scmp.eq.s32.totalorder %s18, 0
      %p45 = por %p43, %p44
      %s47 = sadd.s32 %s46, 1
      %p50 = scmp.eq.s32.totalorder %s12, 1
      %p51 = scmp.ne.s32.totalorder %s46, %s48
      %p52 = scmp.eq.s32.totalorder %s12, 0
      %p53 = por %p51, %p52
      %p54 = scmp.ne.s32.totalorder %s46, %s48
      %p55 = scmp.eq.s32.totalorder %s17, 1
      %p56 = por %p54, %p55
      %p57 = scmp.ne.s32.totalorder %s48, %s49
      %p58 = scmp.eq.s32.totalorder %s17, 0
      %p59 = por %p57, %p58
      %p60 = scmp.ne.s32.totalorder %s48, %s49
      %p61 = scmp.eq.s32.totalorder %s18, 1
      %p62 = por %p60, %p61
      %p64 = scmp.ne.s32.totalorder %s49, %s63
      %p65 = scmp.eq.s32.totalorder %s18, 0
      %p66 = por %p64, %p65
      %s68 = sadd.s32 %s67, 1
      %p71 = scmp.eq.s32.totalorder %s12, 1
      %p72 = scmp.ne.s32.totalorder %s67, %s69
      %p73 = scmp.eq.s32.totalorder %s12, 0
      %p74 = por %p72, %p73
      %p75 = scmp.ne.s32.totalorder %s67, %s69
      %p76 = scmp.eq.s32.totalorder %s17, 1
      %p77 = por %p75, %p76
      %p78 = scmp.ne.s32.totalorder %s69, %s70
      %p79 = scmp.eq.s32.totalorder %s17, 0
      %p80 = por %p78, %p79
      %p81 = scmp.ne.s32.totalorder %s69, %s70
      %p82 = scmp.eq.s32.totalorder %s18, 1
      %p83 = por %p81, %p82
      %p85 = scmp.ne.s32.totalorder %s70, %s84
      %p86 = scmp.eq.s32.totalorder %s18, 0
      %p87 = por %p85, %p86
      %s88 = ssub.s32 %s12, %s19
      %p89 = scmp.eq.s32.totalorder %s88, 0
      %s91 = sadd.s32 %s90, 1
      %s92 = scalar_select %p89, %s90, %s91
      %p95 = pneg %p89
      %p96 = scmp.eq.s32.totalorder %s12, 1
      %p97 = por %p95, %p96
      %p98 = scmp.ne.s32.totalorder %s90, %s93
      %p99 = scmp.eq.s32.totalorder %s12, 0
      %p100 = por %p98, %p99
      %p101 = scmp.ne.s32.totalorder %s90, %s93
      %p102 = scmp.eq.s32.totalorder %s17, 1
      %p103 = por %p101, %p102
      %p104 = scmp.ne.s32.totalorder %s93, %s94
      %p105 = scmp.eq.s32.totalorder %s17, 0
      %p106 = por %p104, %p105
      %p107 = scmp.ne.s32.totalorder %s93, %s94
      %p108 = scmp.eq.s32.totalorder %s18, 1
      %p109 = por %p107, %p108
      %p111 = scmp.ne.s32.totalorder %s94, %s110
      %p112 = scmp.eq.s32.totalorder %s18, 0
      %p113 = por %p111, %p112
      %p114 = scmp.le.s32.totalorder 1, %s12
      %p115 = scmp.lt.s32.totalorder %s12, 3
      %p116 = pnand %p114, %p115
      %p117 = pneg %p116
      // Predicated region
      $region9: #{tpu_custom_call.1} parent=5 // pred_check
        _
      $region10: #{tpu_custom_call.1} parent=5 // pred_check_branch
        %119 = sbr.rel (%p116) target = $region12
      $region11: #{tpu_custom_call.1} parent=5 // pred_region
        %s120 = ssub.s32 %s12, 1
        // Predicated region
        $region13: #{tpu_custom_call.1} parent=11 // pred_check
          %p121 = pneg %p59
        $region14: #{tpu_custom_call.1} parent=11 // pred_check_branch
          %123 = sbr.rel (%p121) target = $region16
        $region15: #{tpu_custom_call.1} parent=11 // pred_region
          _
        $region16: #{tpu_custom_call.1} parent=11 // pred_fallthru
          _
        // Predicated region
        $region17: #{tpu_custom_call.1} parent=11 // pred_check
          %p124 = pneg %p80
        $region18: #{tpu_custom_call.1} parent=11 // pred_check_branch
          %126 = sbr.rel (%p124) target = $region20
        $region19: #{tpu_custom_call.1} parent=11 // pred_region
          _
        $region20: #{tpu_custom_call.1} parent=11 // pred_fallthru
          _
      $region12: #{tpu_custom_call.1} parent=5 // pred_fallthru
        _
      %p127 = scmp.lt.s32.totalorder %s12, 2
      // Predicated region
      $region21: #{tpu_custom_call.1} parent=5 // pred_check
        %p128 = pneg %p127
      $region22: #{tpu_custom_call.1} parent=5 // pred_check_branch
        %130 = sbr.rel (%p128) target = $region24
      $region23: #{tpu_custom_call.1} parent=5 // pred_region
        // Predicated region
        $region25: #{tpu_custom_call.1} parent=23 // pred_check
          %p131 = pneg %p32
        $region26: #{tpu_custom_call.1} parent=23 // pred_check_branch
          %133 = sbr.rel (%p131) target = $region28
        $region27: #{tpu_custom_call.1} parent=23 // pred_region
          %p134 = scmp.lt.s32.totalorder %s12, 1
          %s135 = scalar_select %p134, %s12, 1
          %s136 = smul.addr %s135, 3
          %s137 = smul.addr %s136, 4
          %s138 = scalar_lea.vmem %s0, %s137
        $region28: #{tpu_custom_call.1} parent=23 // pred_fallthru
          _
      $region24: #{tpu_custom_call.1} parent=5 // pred_fallthru
        _
      %p139 = scmp.le.s32.totalorder 1, %s12
      %p140 = scmp.lt.s32.totalorder %s12, 3
      %p141 = pnand %p139, %p140
      %p142 = pneg %p141
      // Predicated region
      $region29: #{tpu_custom_call.1} parent=5 // pred_check
        _
      $region30: #{tpu_custom_call.1} parent=5 // pred_check_branch
        %144 = sbr.rel (%p141) target = $region32
      $region31: #{tpu_custom_call.1} parent=5 // pred_region
        %s145 = ssub.s32 %s12, 1
        %p146 = scmp.lt.s32.totalorder %s17, 1
        %s147 = scalar_select %p146, %s17, 1
        %s148 = smul.addr %s147, 3
        %s149 = smul.addr %s148, 4
        %s150 = scalar_lea.vmem %s0, %s149
        %p151 = pneg %p38
        %p152 = pneg %p35
        %p153 = pneg %p59
        %p154 = pneg %p56
        %p155 = pneg %p80
        %p156 = pneg %p77
        %p157 = pneg %p106
        %p158 = pneg %p103
        %s159 = sand.u32 %s93, 1
        %s160 = scalar_lea.sflag [#allocation3], %s159
        %s161 = sand.u32 %s93, 1
        %s162 = smul.addr %s161, 96
        %s163 = scalar_lea.vmem [#allocation2], %s162
        %p164 = scmp.lt.s32.totalorder %s17, 1
        %s165 = scalar_select %p164, %s17, 1
        %s166 = smul.addr %s165, 3
        %s167 = smul.addr %s166, 4
        %s168 = scalar_lea.vmem %s0, %s167
        %v170 = vld [vmem:[%s168] sm:$0xff]
        %v171 = vld [vmem:[%s168 + $0x8] sm:$0xf]
        %v172 = vld [vmem:[%s1] sm:$0xf]
        %s173 = scalar_lea.vmem %s1, 4
        %v174 = vld [vmem:[%s173] sm:$0xf]
        %v177 = vunpack.c.l.b16 %v170
        %v178 = vunpack.c.h.b16 %v170
        %v179 = vunpack.c.l.b16 %v171
        %v180 = vpack.c.b16 %v177, %v177
        %v181 = vpack.c.b16 %v178, %v178
        %v182 = vpack.c.b16 %v179, %v179
        %183 = vrot.lane.b32.xlu0 %v180, 127
        %v184 = vpop.permute.xlu0 %183
        %185 = vrot.lane.b32.xlu0 %v181, 127
        %v186 = vpop.permute.xlu0 %185
        %187 = vrot.lane.b32.xlu0 %v182, 127
        %v188 = vpop.permute.xlu0 %187
        %vm189 = vcmask 1039360
        %v190 = vsel %vm189, %v184, %v186
        %v191 = vsel %vm189, %v186, %v188
        %vm192 = vcmask 64512
        %v194 = vsel %vm192, %v174, 0
        %vm196 = vcmask 1043456
        %v198 = vsel %vm196, %v190, 0
        %v201 = vsel %vm196, %v191, 0
        %v204 = vsel %vm196, %v188, 0
        %206 = vmatpush.bf16.msra.mxu0 0
        %207 = vmatpush.bf16.msra.mxu0 0
        %208 = vmatpush.bf16.msra.mxu0 0
        %209 = vmatpush.bf16.msra.mxu0 0
        %210 = vmatpush.bf16.msra.mxu0 0
        %211 = vmatpush.bf16.msra.mxu0 0
        %212 = vmatpush.bf16.msra.mxu0 0
        %213 = vmatpush.bf16.msra.mxu0 %v198
        %214 = vmatmul.bf16.gmra.mxu0 %v194
        %v215 = vpop.f32.mrf.mxu0
        %v216 = vadd.f32 0.0, %v215
        %v217 = vpop.f32.mrf.mxu0
        %218 = vdwg.mxu0
        %219 = vmatpush.bf16.msra.mxu0 0
        %220 = vmatpush.bf16.msra.mxu0 0
        %221 = vmatpush.bf16.msra.mxu0 0
        %222 = vmatpush.bf16.msra.mxu0 0
        %223 = vmatpush.bf16.msra.mxu0 0
        %224 = vmatpush.bf16.msra.mxu0 0
        %225 = vmatpush.bf16.msra.mxu0 0
        %226 = vmatpush.bf16.msra.mxu0 %v201
        %227 = vmatmul.bf16.gmra.mxu0 %v194
        %v228 = vpop.f32.mrf.mxu0
        %v229 = vadd.f32 0.0, %v228
        %v230 = vpop.f32.mrf.mxu0
        %231 = vdwg.mxu0
        %232 = vmatpush.bf16.msra.mxu0 0
        %233 = vmatpush.bf16.msra.mxu0 0
        %234 = vmatpush.bf16.msra.mxu0 0
        %235 = vmatpush.bf16.msra.mxu0 0
        %236 = vmatpush.bf16.msra.mxu0 0
        %237 = vmatpush.bf16.msra.mxu0 0
        %238 = vmatpush.bf16.msra.mxu0 0
        %239 = vmatpush.bf16.msra.mxu0 %v204
        %240 = vmatmul.bf16.gmra.mxu0 %v194
        %v241 = vpop.f32.mrf.mxu0
        %v242 = vadd.f32 0.0, %v241
        %v243 = vpop.f32.mrf.mxu0
        %244 = vdwg.mxu0
        %v246 = vsel %vm192, %v172, 0
        %v249 = vsel %vm196, %v180, 0
        %v252 = vsel %vm196, %v181, 0
        %v255 = vsel %vm196, %v182, 0
        %257 = vmatpush.bf16.msra.mxu0 0
        %258 = vmatpush.bf16.msra.mxu0 0
        %259 = vmatpush.bf16.msra.mxu0 0
        %260 = vmatpush.bf16.msra.mxu0 0
        %261 = vmatpush.bf16.msra.mxu0 0
        %262 = vmatpush.bf16.msra.mxu0 0
        %263 = vmatpush.bf16.msra.mxu0 0
        %264 = vmatpush.bf16.msra.mxu0 %v249
        %265 = vmatmul.bf16.gmra.mxu0 %v246
        %v266 = vpop.f32.mrf.mxu0
        %v267 = vadd.f32 %v216, %v266
        %v268 = vpop.f32.mrf.mxu0
        %269 = vdwg.mxu0
        %270 = vmatpush.bf16.msra.mxu0 0
        %271 = vmatpush.bf16.msra.mxu0 0
        %272 = vmatpush.bf16.msra.mxu0 0
        %273 = vmatpush.bf16.msra.mxu0 0
        %274 = vmatpush.bf16.msra.mxu0 0
        %275 = vmatpush.bf16.msra.mxu0 0
        %276 = vmatpush.bf16.msra.mxu0 0
        %277 = vmatpush.bf16.msra.mxu0 %v252
        %278 = vmatmul.bf16.gmra.mxu0 %v246
        %v279 = vpop.f32.mrf.mxu0
        %v280 = vadd.f32 %v229, %v279
        %v281 = vpop.f32.mrf.mxu0
        %282 = vdwg.mxu0
        %283 = vmatpush.bf16.msra.mxu0 0
        %284 = vmatpush.bf16.msra.mxu0 0
        %285 = vmatpush.bf16.msra.mxu0 0
        %286 = vmatpush.bf16.msra.mxu0 0
        %287 = vmatpush.bf16.msra.mxu0 0
        %288 = vmatpush.bf16.msra.mxu0 0
        %289 = vmatpush.bf16.msra.mxu0 0
        %290 = vmatpush.bf16.msra.mxu0 %v255
        %291 = vmatmul.bf16.gmra.mxu0 %v246
        %v292 = vpop.f32.mrf.mxu0
        %v293 = vadd.f32 %v242, %v292
        %v294 = vpop.f32.mrf.mxu0
        %295 = vdwg.mxu0
        %s296 = scalar_lea.vmem %s1, 8
        %v297 = vld [vmem:[%s296] sm:$0xf]
        %298 = vrot.lane.b32.xlu0 %v180, 110
        %v299 = vpop.permute.xlu0 %298
        %300 = vrot.lane.b32.xlu0 %v181, 110
        %v301 = vpop.permute.xlu0 %300
        %302 = vrot.lane.b32.xlu0 %v182, 110
        %v303 = vpop.permute.xlu0 %302
        %vm304 = vcmask 900096
        %v305 = vsel %vm304, %v299, %v301
        %v306 = vsel %vm304, %v301, %v303
        %v308 = vsel %vm192, %v297, 0
        %v311 = vsel %vm196, %v305, 0
        %v314 = vsel %vm196, %v306, 0
        %v317 = vsel %vm196, %v303, 0
        %319 = vmatpush.bf16.msra.mxu0 0
        %320 = vmatpush.bf16.msra.mxu0 0
        %321 = vmatpush.bf16.msra.mxu0 0
        %322 = vmatpush.bf16.msra.mxu0 0
        %323 = vmatpush.bf16.msra.mxu0 0
        %324 = vmatpush.bf16.msra.mxu0 0
        %325 = vmatpush.bf16.msra.mxu0 0
        %326 = vmatpush.bf16.msra.mxu0 %v311
        %327 = vmatmul.bf16.gmra.mxu0 %v308
        %v328 = vpop.f32.mrf.mxu0
        %v329 = vadd.f32 0.0, %v328
        %v330 = vpop.f32.mrf.mxu0
        %331 = vdwg.mxu0
        %332 = vmatpush.bf16.msra.mxu0 0
        %333 = vmatpush.bf16.msra.mxu0 0
        %334 = vmatpush.bf16.msra.mxu0 0
        %335 = vmatpush.bf16.msra.mxu0 0
        %336 = vmatpush.bf16.msra.mxu0 0
        %337 = vmatpush.bf16.msra.mxu0 0
        %338 = vmatpush.bf16.msra.mxu0 0
        %339 = vmatpush.bf16.msra.mxu0 %v314
        %340 = vmatmul.bf16.gmra.mxu0 %v308
        %v341 = vpop.f32.mrf.mxu0
        %v342 = vadd.f32 0.0, %v341
        %v343 = vpop.f32.mrf.mxu0
        %344 = vdwg.mxu0
        %345 = vmatpush.bf16.msra.mxu0 0
        %346 = vmatpush.bf16.msra.mxu0 0
        %347 = vmatpush.bf16.msra.mxu0 0
        %348 = vmatpush.bf16.msra.mxu0 0
        %349 = vmatpush.bf16.msra.mxu0 0
        %350 = vmatpush.bf16.msra.mxu0 0
        %351 = vmatpush.bf16.msra.mxu0 0
        %352 = vmatpush.bf16.msra.mxu0 %v317
        %353 = vmatmul.bf16.gmra.mxu0 %v308
        %v354 = vpop.f32.mrf.mxu0
        %v355 = vadd.f32 0.0, %v354
        %v356 = vpop.f32.mrf.mxu0
        %357 = vdwg.mxu0
        %v358 = vadd.f32 %v267, %v329
        %v359 = vadd.f32 %v280, %v342
        %v360 = vadd.f32 %v293, %v355
        %s361 = scalar_lea.vmem %s1, 12
        %v362 = vld [vmem:[%s361] sm:$0xf]
        %363 = vrot.lane.b32.xlu0 %v180, 109
        %v364 = vpop.permute.xlu0 %363
        %365 = vrot.lane.b32.xlu0 %v181, 109
        %v366 = vpop.permute.xlu0 %365
        %367 = vrot.lane.b32.xlu0 %v182, 109
        %v368 = vpop.permute.xlu0 %367
        %vm369 = vcmask 891904
        %v370 = vsel %vm369, %v364, %v366
        %v371 = vsel %vm369, %v366, %v368
        %v373 = vsel %vm192, %v362, 0
        %v376 = vsel %vm196, %v370, 0
        %v379 = vsel %vm196, %v371, 0
        %v382 = vsel %vm196, %v368, 0
        %384 = vmatpush.bf16.msra.mxu0 0
        %385 = vmatpush.bf16.msra.mxu0 0
        %386 = vmatpush.bf16.msra.mxu0 0
        %387 = vmatpush.bf16.msra.mxu0 0
        %388 = vmatpush.bf16.msra.mxu0 0
        %389 = vmatpush.bf16.msra.mxu0 0
        %390 = vmatpush.bf16.msra.mxu0 0
        %391 = vmatpush.bf16.msra.mxu0 %v376
        %392 = vmatmul.bf16.gmra.mxu0 %v373
        %v393 = vpop.f32.mrf.mxu0
        %v394 = vadd.f32 0.0, %v393
        %v395 = vpop.f32.mrf.mxu0
        %396 = vdwg.mxu0
        %397 = vmatpush.bf16.msra.mxu0 0
        %398 = vmatpush.bf16.msra.mxu0 0
        %399 = vmatpush.bf16.msra.mxu0 0
        %400 = vmatpush.bf16.msra.mxu0 0
        %401 = vmatpush.bf16.msra.mxu0 0
        %402 = vmatpush.bf16.msra.mxu0 0
        %403 = vmatpush.bf16.msra.mxu0 0
        %404 = vmatpush.bf16.msra.mxu0 %v379
        %405 = vmatmul.bf16.gmra.mxu0 %v373
        %v406 = vpop.f32.mrf.mxu0
        %v407 = vadd.f32 0.0, %v406
        %v408 = vpop.f32.mrf.mxu0
        %409 = vdwg.mxu0
        %410 = vmatpush.bf16.msra.mxu0 0
        %411 = vmatpush.bf16.msra.mxu0 0
        %412 = vmatpush.bf16.msra.mxu0 0
        %413 = vmatpush.bf16.msra.mxu0 0
        %414 = vmatpush.bf16.msra.mxu0 0
        %415 = vmatpush.bf16.msra.mxu0 0
        %416 = vmatpush.bf16.msra.mxu0 0
        %417 = vmatpush.bf16.msra.mxu0 %v382
        %418 = vmatmul.bf16.gmra.mxu0 %v373
        %v419 = vpop.f32.mrf.mxu0
        %v420 = vadd.f32 0.0, %v419
        %v421 = vpop.f32.mrf.mxu0
        %422 = vdwg.mxu0
        %v423 = vadd.f32 %v358, %v394
        %v424 = vadd.f32 %v359, %v407
        %v425 = vadd.f32 %v360, %v420
        %v426 = vld [vmem:[%s2] sm:$0xff]
        %428 = vset.pattern.permute.xlu0 0
        %429 = vperm.xlu0 %428, %v426
        %v430 = vpop.permute.xlu0 %429
        %v432 = vadd.f32 %v423, %v430
        %v433 = vadd.f32 %v424, %v430
        %v434 = vadd.f32 %v425, %v430
        %435 = vst [vmem:[%s163] sm:$0xff] %v432
        %436 = vst [vmem:[%s163 + $0x8] sm:$0xff] %v433
        %vm437 = vcmask 261120
        %438 = vst.msk [vmem:[%s163 + $0x10] sm:$0xff] %vm437, %v434
        %s439 = scalar_lea.vmem %s1, 16
        %v440 = vld [vmem:[%s439] sm:$0xf]
        %s441 = scalar_lea.vmem %s1, 20
        %v442 = vld [vmem:[%s441] sm:$0xf]
        %443 = vrot.lane.b32.xlu0 %v180, 126
        %v444 = vpop.permute.xlu0 %443
        %445 = vrot.lane.b32.xlu0 %v181, 126
        %v446 = vpop.permute.xlu0 %445
        %447 = vrot.lane.b32.xlu0 %v182, 126
        %v448 = vpop.permute.xlu0 %447
        %vm449 = vcmask 1031168
        %v450 = vsel %vm449, %v444, %v446
        %v451 = vsel %vm449, %v446, %v448
        %v453 = vsel %vm192, %v442, 0
        %v456 = vsel %vm196, %v450, 0
        %v459 = vsel %vm196, %v451, 0
        %v462 = vsel %vm196, %v448, 0
        %464 = vmatpush.bf16.msra.mxu0 0
        %465 = vmatpush.bf16.msra.mxu0 0
        %466 = vmatpush.bf16.msra.mxu0 0
        %467 = vmatpush.bf16.msra.mxu0 0
        %468 = vmatpush.bf16.msra.mxu0 0
        %469 = vmatpush.bf16.msra.mxu0 0
        %470 = vmatpush.bf16.msra.mxu0 0
        %471 = vmatpush.bf16.msra.mxu0 %v456
        %472 = vmatmul.bf16.gmra.mxu0 %v453
        %v473 = vpop.f32.mrf.mxu0
        %v474 = vadd.f32 0.0, %v473
        %v475 = vpop.f32.mrf.mxu0
        %476 = vdwg.mxu0
        %477 = vmatpush.bf16.msra.mxu0 0
        %478 = vmatpush.bf16.msra.mxu0 0
        %479 = vmatpush.bf16.msra.mxu0 0
        %480 = vmatpush.bf16.msra.mxu0 0
        %481 = vmatpush.bf16.msra.mxu0 0
        %482 = vmatpush.bf16.msra.mxu0 0
        %483 = vmatpush.bf16.msra.mxu0 0
        %484 = vmatpush.bf16.msra.mxu0 %v459
        %485 = vmatmul.bf16.gmra.mxu0 %v453
        %v486 = vpop.f32.mrf.mxu0
        %v487 = vadd.f32 0.0, %v486
        %v488 = vpop.f32.mrf.mxu0
        %489 = vdwg.mxu0
        %490 = vmatpush.bf16.msra.mxu0 0
        %491 = vmatpush.bf16.msra.mxu0 0
        %492 = vmatpush.bf16.msra.mxu0 0
        %493 = vmatpush.bf16.msra.mxu0 0
        %494 = vmatpush.bf16.msra.mxu0 0
        %495 = vmatpush.bf16.msra.mxu0 0
        %496 = vmatpush.bf16.msra.mxu0 0
        %497 = vmatpush.bf16.msra.mxu0 %v462
        %498 = vmatmul.bf16.gmra.mxu0 %v453
        %v499 = vpop.f32.mrf.mxu0
        %v500 = vadd.f32 0.0, %v499
        %v501 = vpop.f32.mrf.mxu0
        %502 = vdwg.mxu0
        %v504 = vsel %vm192, %v440, 0
        %506 = vmatpush.bf16.msra.mxu0 0
        %507 = vmatpush.bf16.msra.mxu0 0
        %508 = vmatpush.bf16.msra.mxu0 0
        %509 = vmatpush.bf16.msra.mxu0 0
        %510 = vmatpush.bf16.msra.mxu0 0
        %511 = vmatpush.bf16.msra.mxu0 0
        %512 = vmatpush.bf16.msra.mxu0 0
        %513 = vmatpush.bf16.msra.mxu0 %v198
        %514 = vmatmul.bf16.gmra.mxu0 %v504
        %v515 = vpop.f32.mrf.mxu0
        %v516 = vadd.f32 %v474, %v515
        %v517 = vpop.f32.mrf.mxu0
        %518 = vdwg.mxu0
        %519 = vmatpush.bf16.msra.mxu0 0
        %520 = vmatpush.bf16.msra.mxu0 0
        %521 = vmatpush.bf16.msra.mxu0 0
        %522 = vmatpush.bf16.msra.mxu0 0
        %523 = vmatpush.bf16.msra.mxu0 0
        %524 = vmatpush.bf16.msra.mxu0 0
        %525 = vmatpush.bf16.msra.mxu0 0
        %526 = vmatpush.bf16.msra.mxu0 %v201
        %527 = vmatmul.bf16.gmra.mxu0 %v504
        %v528 = vpop.f32.mrf.mxu0
        %v529 = vadd.f32 %v487, %v528
        %v530 = vpop.f32.mrf.mxu0
        %531 = vdwg.mxu0
        %532 = vmatpush.bf16.msra.mxu0 0
        %533 = vmatpush.bf16.msra.mxu0 0
        %534 = vmatpush.bf16.msra.mxu0 0
        %535 = vmatpush.bf16.msra.mxu0 0
        %536 = vmatpush.bf16.msra.mxu0 0
        %537 = vmatpush.bf16.msra.mxu0 0
        %538 = vmatpush.bf16.msra.mxu0 0
        %539 = vmatpush.bf16.msra.mxu0 %v204
        %540 = vmatmul.bf16.gmra.mxu0 %v504
        %v541 = vpop.f32.mrf.mxu0
        %v542 = vadd.f32 %v500, %v541
        %v543 = vpop.f32.mrf.mxu0
        %544 = vdwg.mxu0
        %s545 = scalar_lea.vmem %s1, 24
        %v546 = vld [vmem:[%s545] sm:$0xf]
        %v548 = vsel %vm192, %v546, 0
        %550 = vmatpush.bf16.msra.mxu0 0
        %551 = vmatpush.bf16.msra.mxu0 0
        %552 = vmatpush.bf16.msra.mxu0 0
        %553 = vmatpush.bf16.msra.mxu0 0
        %554 = vmatpush.bf16.msra.mxu0 0
        %555 = vmatpush.bf16.msra.mxu0 0
        %556 = vmatpush.bf16.msra.mxu0 0
        %557 = vmatpush.bf16.msra.mxu0 %v376
        %558 = vmatmul.bf16.gmra.mxu0 %v548
        %v559 = vpop.f32.mrf.mxu0
        %v560 = vadd.f32 0.0, %v559
        %v561 = vpop.f32.mrf.mxu0
        %562 = vdwg.mxu0
        %563 = vmatpush.bf16.msra.mxu0 0
        %564 = vmatpush.bf16.msra.mxu0 0
        %565 = vmatpush.bf16.msra.mxu0 0
        %566 = vmatpush.bf16.msra.mxu0 0
        %567 = vmatpush.bf16.msra.mxu0 0
        %568 = vmatpush.bf16.msra.mxu0 0
        %569 = vmatpush.bf16.msra.mxu0 0
        %570 = vmatpush.bf16.msra.mxu0 %v379
        %571 = vmatmul.bf16.gmra.mxu0 %v548
        %v572 = vpop.f32.mrf.mxu0
        %v573 = vadd.f32 0.0, %v572
        %v574 = vpop.f32.mrf.mxu0
        %575 = vdwg.mxu0
        %576 = vmatpush.bf16.msra.mxu0 0
        %577 = vmatpush.bf16.msra.mxu0 0
        %578 = vmatpush.bf16.msra.mxu0 0
        %579 = vmatpush.bf16.msra.mxu0 0
        %580 = vmatpush.bf16.msra.mxu0 0
        %581 = vmatpush.bf16.msra.mxu0 0
        %582 = vmatpush.bf16.msra.mxu0 0
        %583 = vmatpush.bf16.msra.mxu0 %v382
        %584 = vmatmul.bf16.gmra.mxu0 %v548
        %v585 = vpop.f32.mrf.mxu0
        %v586 = vadd.f32 0.0, %v585
        %v587 = vpop.f32.mrf.mxu0
        %588 = vdwg.mxu0
        %v589 = vadd.f32 %v516, %v560
        %v590 = vadd.f32 %v529, %v573
        %v591 = vadd.f32 %v542, %v586
        %s592 = scalar_lea.vmem %s1, 28
        %v593 = vld [vmem:[%s592] sm:$0xf]
        %594 = vrot.lane.b32.xlu0 %v180, 108
        %v595 = vpop.permute.xlu0 %594
        %596 = vrot.lane.b32.xlu0 %v181, 108
        %v597 = vpop.permute.xlu0 %596
        %598 = vrot.lane.b32.xlu0 %v182, 108
        %v599 = vpop.permute.xlu0 %598
        %vm600 = vcmask 883712
        %v601 = vsel %vm600, %v595, %v597
        %v602 = vsel %vm600, %v597, %v599
        %v604 = vsel %vm192, %v593, 0
        %v607 = vsel %vm196, %v601, 0
        %v610 = vsel %vm196, %v602, 0
        %v613 = vsel %vm196, %v599, 0
        %615 = vmatpush.bf16.msra.mxu0 0
        %616 = vmatpush.bf16.msra.mxu0 0
        %617 = vmatpush.bf16.msra.mxu0 0
        %618 = vmatpush.bf16.msra.mxu0 0
        %619 = vmatpush.bf16.msra.mxu0 0
        %620 = vmatpush.bf16.msra.mxu0 0
        %621 = vmatpush.bf16.msra.mxu0 0
        %622 = vmatpush.bf16.msra.mxu0 %v607
        %623 = vmatmul.bf16.gmra.mxu0 %v604
        %v624 = vpop.f32.mrf.mxu0
        %v625 = vadd.f32 0.0, %v624
        %v626 = vpop.f32.mrf.mxu0
        %627 = vdwg.mxu0
        %628 = vmatpush.bf16.msra.mxu0 0
        %629 = vmatpush.bf16.msra.mxu0 0
        %630 = vmatpush.bf16.msra.mxu0 0
        %631 = vmatpush.bf16.msra.mxu0 0
        %632 = vmatpush.bf16.msra.mxu0 0
        %633 = vmatpush.bf16.msra.mxu0 0
        %634 = vmatpush.bf16.msra.mxu0 0
        %635 = vmatpush.bf16.msra.mxu0 %v610
        %636 = vmatmul.bf16.gmra.mxu0 %v604
        %v637 = vpop.f32.mrf.mxu0
        %v638 = vadd.f32 0.0, %v637
        %v639 = vpop.f32.mrf.mxu0
        %640 = vdwg.mxu0
        %641 = vmatpush.bf16.msra.mxu0 0
        %642 = vmatpush.bf16.msra.mxu0 0
        %643 = vmatpush.bf16.msra.mxu0 0
        %644 = vmatpush.bf16.msra.mxu0 0
        %645 = vmatpush.bf16.msra.mxu0 0
        %646 = vmatpush.bf16.msra.mxu0 0
        %647 = vmatpush.bf16.msra.mxu0 0
        %648 = vmatpush.bf16.msra.mxu0 %v613
        %649 = vmatmul.bf16.gmra.mxu0 %v604
        %v650 = vpop.f32.mrf.mxu0
        %v651 = vadd.f32 0.0, %v650
        %v652 = vpop.f32.mrf.mxu0
        %653 = vdwg.mxu0
        %v654 = vadd.f32 %v589, %v625
        %v655 = vadd.f32 %v590, %v638
        %v656 = vadd.f32 %v591, %v651
        %s657 = scalar_lea.vmem %s2, 8
        %v658 = vld [vmem:[%s657] sm:$0xff]
        %660 = vset.pattern.permute.xlu0 0
        %661 = vperm.xlu0 %660, %v658
        %v662 = vpop.permute.xlu0 %661
        %v664 = vadd.f32 %v654, %v662
        %v665 = vadd.f32 %v655, %v662
        %v666 = vadd.f32 %v656, %v662
        %s667 = scalar_lea.vmem %s163, 24 [#allocation2]
        %668 = vst [vmem:[%s667] sm:$0xff] %v664
        %669 = vst [vmem:[%s667 + $0x8] sm:$0xff] %v665
        %670 = vst.msk [vmem:[%s667 + $0x10] sm:$0xff] %vm437, %v666
        %s671 = scalar_lea.vmem %s1, 32
        %v672 = vld [vmem:[%s671] sm:$0xf]
        %s673 = scalar_lea.vmem %s1, 36
        %v674 = vld [vmem:[%s673] sm:$0xf]
        %v676 = vsel %vm192, %v674, 0
        %678 = vmatpush.bf16.msra.mxu0 0
        %679 = vmatpush.bf16.msra.mxu0 0
        %680 = vmatpush.bf16.msra.mxu0 0
        %681 = vmatpush.bf16.msra.mxu0 0
        %682 = vmatpush.bf16.msra.mxu0 0
        %683 = vmatpush.bf16.msra.mxu0 0
        %684 = vmatpush.bf16.msra.mxu0 0
        %685 = vmatpush.bf16.msra.mxu0 %v376
        %686 = vmatmul.bf16.gmra.mxu0 %v676
        %v687 = vpop.f32.mrf.mxu0
        %v688 = vadd.f32 0.0, %v687
        %v689 = vpop.f32.mrf.mxu0
        %690 = vdwg.mxu0
        %691 = vmatpush.bf16.msra.mxu0 0
        %692 = vmatpush.bf16.msra.mxu0 0
        %693 = vmatpush.bf16.msra.mxu0 0
        %694 = vmatpush.bf16.msra.mxu0 0
        %695 = vmatpush.bf16.msra.mxu0 0
        %696 = vmatpush.bf16.msra.mxu0 0
        %697 = vmatpush.bf16.msra.mxu0 0
        %698 = vmatpush.bf16.msra.mxu0 %v379
        %699 = vmatmul.bf16.gmra.mxu0 %v676
        %v700 = vpop.f32.mrf.mxu0
        %v701 = vadd.f32 0.0, %v700
        %v702 = vpop.f32.mrf.mxu0
        %703 = vdwg.mxu0
        %704 = vmatpush.bf16.msra.mxu0 0
        %705 = vmatpush.bf16.msra.mxu0 0
        %706 = vmatpush.bf16.msra.mxu0 0
        %707 = vmatpush.bf16.msra.mxu0 0
        %708 = vmatpush.bf16.msra.mxu0 0
        %709 = vmatpush.bf16.msra.mxu0 0
        %710 = vmatpush.bf16.msra.mxu0 0
        %711 = vmatpush.bf16.msra.mxu0 %v382
        %712 = vmatmul.bf16.gmra.mxu0 %v676
        %v713 = vpop.f32.mrf.mxu0
        %v714 = vadd.f32 0.0, %v713
        %v715 = vpop.f32.mrf.mxu0
        %716 = vdwg.mxu0
        %v718 = vsel %vm192, %v672, 0
        %720 = vmatpush.bf16.msra.mxu0 0
        %721 = vmatpush.bf16.msra.mxu0 0
        %722 = vmatpush.bf16.msra.mxu0 0
        %723 = vmatpush.bf16.msra.mxu0 0
        %724 = vmatpush.bf16.msra.mxu0 0
        %725 = vmatpush.bf16.msra.mxu0 0
        %726 = vmatpush.bf16.msra.mxu0 0
        %727 = vmatpush.bf16.msra.mxu0 %v311
        %728 = vmatmul.bf16.gmra.mxu0 %v718
        %v729 = vpop.f32.mrf.mxu0
        %v730 = vadd.f32 %v688, %v729
        %v731 = vpop.f32.mrf.mxu0
        %732 = vdwg.mxu0
        %733 = vmatpush.bf16.msra.mxu0 0
        %734 = vmatpush.bf16.msra.mxu0 0
        %735 = vmatpush.bf16.msra.mxu0 0
        %736 = vmatpush.bf16.msra.mxu0 0
        %737 = vmatpush.bf16.msra.mxu0 0
        %738 = vmatpush.bf16.msra.mxu0 0
        %739 = vmatpush.bf16.msra.mxu0 0
        %740 = vmatpush.bf16.msra.mxu0 %v314
        %741 = vmatmul.bf16.gmra.mxu0 %v718
        %v742 = vpop.f32.mrf.mxu0
        %v743 = vadd.f32 %v701, %v742
        %v744 = vpop.f32.mrf.mxu0
        %745 = vdwg.mxu0
        %746 = vmatpush.bf16.msra.mxu0 0
        %747 = vmatpush.bf16.msra.mxu0 0
        %748 = vmatpush.bf16.msra.mxu0 0
        %749 = vmatpush.bf16.msra.mxu0 0
        %750 = vmatpush.bf16.msra.mxu0 0
        %751 = vmatpush.bf16.msra.mxu0 0
        %752 = vmatpush.bf16.msra.mxu0 0
        %753 = vmatpush.bf16.msra.mxu0 %v317
        %754 = vmatmul.bf16.gmra.mxu0 %v718
        %v755 = vpop.f32.mrf.mxu0
        %v756 = vadd.f32 %v714, %v755
        %v757 = vpop.f32.mrf.mxu0
        %758 = vdwg.mxu0
        %s759 = scalar_lea.vmem %s1, 40
        %v760 = vld [vmem:[%s759] sm:$0xf]
        %761 = vrot.lane.b32.xlu0 %v180, 92
        %v762 = vpop.permute.xlu0 %761
        %763 = vrot.lane.b32.xlu0 %v181, 92
        %v764 = vpop.permute.xlu0 %763
        %765 = vrot.lane.b32.xlu0 %v182, 92
        %v766 = vpop.permute.xlu0 %765
        %vm767 = vcmask 752640
        %v768 = vsel %vm767, %v762, %v764
        %v769 = vsel %vm767, %v764, %v766
        %v771 = vsel %vm192, %v760, 0
        %v774 = vsel %vm196, %v768, 0
        %v777 = vsel %vm196, %v769, 0
        %v780 = vsel %vm196, %v766, 0
        %782 = vmatpush.bf16.msra.mxu0 0
        %783 = vmatpush.bf16.msra.mxu0 0
        %784 = vmatpush.bf16.msra.mxu0 0
        %785 = vmatpush.bf16.msra.mxu0 0
        %786 = vmatpush.bf16.msra.mxu0 0
        %787 = vmatpush.bf16.msra.mxu0 0
        %788 = vmatpush.bf16.msra.mxu0 0
        %789 = vmatpush.bf16.msra.mxu0 %v774
        %790 = vmatmul.bf16.gmra.mxu0 %v771
        %v791 = vpop.f32.mrf.mxu0
        %v792 = vadd.f32 0.0, %v791
        %v793 = vpop.f32.mrf.mxu0
        %794 = vdwg.mxu0
        %795 = vmatpush.bf16.msra.mxu0 0
        %796 = vmatpush.bf16.msra.mxu0 0
        %797 = vmatpush.bf16.msra.mxu0 0
        %798 = vmatpush.bf16.msra.mxu0 0
        %799 = vmatpush.bf16.msra.mxu0 0
        %800 = vmatpush.bf16.msra.mxu0 0
        %801 = vmatpush.bf16.msra.mxu0 0
        %802 = vmatpush.bf16.msra.mxu0 %v777
        %803 = vmatmul.bf16.gmra.mxu0 %v771
        %v804 = vpop.f32.mrf.mxu0
        %v805 = vadd.f32 0.0, %v804
        %v806 = vpop.f32.mrf.mxu0
        %807 = vdwg.mxu0
        %808 = vmatpush.bf16.msra.mxu0 0
        %809 = vmatpush.bf16.msra.mxu0 0
        %810 = vmatpush.bf16.msra.mxu0 0
        %811 = vmatpush.bf16.msra.mxu0 0
        %812 = vmatpush.bf16.msra.mxu0 0
        %813 = vmatpush.bf16.msra.mxu0 0
        %814 = vmatpush.bf16.msra.mxu0 0
        %815 = vmatpush.bf16.msra.mxu0 %v780
        %816 = vmatmul.bf16.gmra.mxu0 %v771
        %v817 = vpop.f32.mrf.mxu0
        %v818 = vadd.f32 0.0, %v817
        %v819 = vpop.f32.mrf.mxu0
        %820 = vdwg.mxu0
        %v821 = vadd.f32 %v730, %v792
        %v822 = vadd.f32 %v743, %v805
        %v823 = vadd.f32 %v756, %v818
        %s824 = scalar_lea.vmem %s1, 44
        %v825 = vld [vmem:[%s824] sm:$0xf]
        %826 = vrot.lane.b32.xlu0 %v180, 91
        %v827 = vpop.permute.xlu0 %826
        %828 = vrot.lane.b32.xlu0 %v181, 91
        %v829 = vpop.permute.xlu0 %828
        %830 = vrot.lane.b32.xlu0 %v182, 91
        %v831 = vpop.permute.xlu0 %830
        %vm832 = vcmask 744448
        %v833 = vsel %vm832, %v827, %v829
        %v834 = vsel %vm832, %v829, %v831
        %v836 = vsel %vm192, %v825, 0
        %v839 = vsel %vm196, %v833, 0
        %v842 = vsel %vm196, %v834, 0
        %v845 = vsel %vm196, %v831, 0
        %847 = vmatpush.bf16.msra.mxu0 0
        %848 = vmatpush.bf16.msra.mxu0 0
        %849 = vmatpush.bf16.msra.mxu0 0
        %850 = vmatpush.bf16.msra.mxu0 0
        %851 = vmatpush.bf16.msra.mxu0 0
        %852 = vmatpush.bf16.msra.mxu0 0
        %853 = vmatpush.bf16.msra.mxu0 0
        %854 = vmatpush.bf16.msra.mxu0 %v839
        %855 = vmatmul.bf16.gmra.mxu0 %v836
        %v856 = vpop.f32.mrf.mxu0
        %v857 = vadd.f32 0.0, %v856
        %v858 = vpop.f32.mrf.mxu0
        %859 = vdwg.mxu0
        %860 = vmatpush.bf16.msra.mxu0 0
        %861 = vmatpush.bf16.msra.mxu0 0
        %862 = vmatpush.bf16.msra.mxu0 0
        %863 = vmatpush.bf16.msra.mxu0 0
        %864 = vmatpush.bf16.msra.mxu0 0
        %865 = vmatpush.bf16.msra.mxu0 0
        %866 = vmatpush.bf16.msra.mxu0 0
        %867 = vmatpush.bf16.msra.mxu0 %v842
        %868 = vmatmul.bf16.gmra.mxu0 %v836
        %v869 = vpop.f32.mrf.mxu0
        %v870 = vadd.f32 0.0, %v869
        %v871 = vpop.f32.mrf.mxu0
        %872 = vdwg.mxu0
        %873 = vmatpush.bf16.msra.mxu0 0
        %874 = vmatpush.bf16.msra.mxu0 0
        %875 = vmatpush.bf16.msra.mxu0 0
        %876 = vmatpush.bf16.msra.mxu0 0
        %877 = vmatpush.bf16.msra.mxu0 0
        %878 = vmatpush.bf16.msra.mxu0 0
        %879 = vmatpush.bf16.msra.mxu0 0
        %880 = vmatpush.bf16.msra.mxu0 %v845
        %881 = vmatmul.bf16.gmra.mxu0 %v836
        %v882 = vpop.f32.mrf.mxu0
        %v883 = vadd.f32 0.0, %v882
        %v884 = vpop.f32.mrf.mxu0
        %885 = vdwg.mxu0
        %v886 = vadd.f32 %v821, %v857
        %v887 = vadd.f32 %v822, %v870
        %v888 = vadd.f32 %v823, %v883
        %s889 = scalar_lea.vmem %s2, 16
        %v890 = vld [vmem:[%s889] sm:$0xff]
        %892 = vset.pattern.permute.xlu0 0
        %893 = vperm.xlu0 %892, %v890
        %v894 = vpop.permute.xlu0 %893
        %v896 = vadd.f32 %v886, %v894
        %v897 = vadd.f32 %v887, %v894
        %v898 = vadd.f32 %v888, %v894
        %s899 = scalar_lea.vmem %s163, 48 [#allocation2]
        %900 = vst [vmem:[%s899] sm:$0xff] %v896
        %901 = vst [vmem:[%s899 + $0x8] sm:$0xff] %v897
        %902 = vst.msk [vmem:[%s899 + $0x10] sm:$0xff] %vm437, %v898
        %s903 = scalar_lea.vmem %s1, 48
        %v904 = vld [vmem:[%s903] sm:$0xf]
        %s905 = scalar_lea.vmem %s1, 52
        %v906 = vld [vmem:[%s905] sm:$0xf]
        %v908 = vsel %vm192, %v906, 0
        %910 = vmatpush.bf16.msra.mxu0 0
        %911 = vmatpush.bf16.msra.mxu0 0
        %912 = vmatpush.bf16.msra.mxu0 0
        %913 = vmatpush.bf16.msra.mxu0 0
        %914 = vmatpush.bf16.msra.mxu0 0
        %915 = vmatpush.bf16.msra.mxu0 0
        %916 = vmatpush.bf16.msra.mxu0 0
        %917 = vmatpush.bf16.msra.mxu0 %v607
        %918 = vmatmul.bf16.gmra.mxu0 %v908
        %v919 = vpop.f32.mrf.mxu0
        %v920 = vadd.f32 0.0, %v919
        %v921 = vpop.f32.mrf.mxu0
        %922 = vdwg.mxu0
        %923 = vmatpush.bf16.msra.mxu0 0
        %924 = vmatpush.bf16.msra.mxu0 0
        %925 = vmatpush.bf16.msra.mxu0 0
        %926 = vmatpush.bf16.msra.mxu0 0
        %927 = vmatpush.bf16.msra.mxu0 0
        %928 = vmatpush.bf16.msra.mxu0 0
        %929 = vmatpush.bf16.msra.mxu0 0
        %930 = vmatpush.bf16.msra.mxu0 %v610
        %931 = vmatmul.bf16.gmra.mxu0 %v908
        %v932 = vpop.f32.mrf.mxu0
        %v933 = vadd.f32 0.0, %v932
        %v934 = vpop.f32.mrf.mxu0
        %935 = vdwg.mxu0
        %936 = vmatpush.bf16.msra.mxu0 0
        %937 = vmatpush.bf16.msra.mxu0 0
        %938 = vmatpush.bf16.msra.mxu0 0
        %939 = vmatpush.bf16.msra.mxu0 0
        %940 = vmatpush.bf16.msra.mxu0 0
        %941 = vmatpush.bf16.msra.mxu0 0
        %942 = vmatpush.bf16.msra.mxu0 0
        %943 = vmatpush.bf16.msra.mxu0 %v613
        %944 = vmatmul.bf16.gmra.mxu0 %v908
        %v945 = vpop.f32.mrf.mxu0
        %v946 = vadd.f32 0.0, %v945
        %v947 = vpop.f32.mrf.mxu0
        %948 = vdwg.mxu0
        %v950 = vsel %vm192, %v904, 0
        %952 = vmatpush.bf16.msra.mxu0 0
        %953 = vmatpush.bf16.msra.mxu0 0
        %954 = vmatpush.bf16.msra.mxu0 0
        %955 = vmatpush.bf16.msra.mxu0 0
        %956 = vmatpush.bf16.msra.mxu0 0
        %957 = vmatpush.bf16.msra.mxu0 0
        %958 = vmatpush.bf16.msra.mxu0 0
        %959 = vmatpush.bf16.msra.mxu0 %v376
        %960 = vmatmul.bf16.gmra.mxu0 %v950
        %v961 = vpop.f32.mrf.mxu0
        %v962 = vadd.f32 %v920, %v961
        %v963 = vpop.f32.mrf.mxu0
        %964 = vdwg.mxu0
        %965 = vmatpush.bf16.msra.mxu0 0
        %966 = vmatpush.bf16.msra.mxu0 0
        %967 = vmatpush.bf16.msra.mxu0 0
        %968 = vmatpush.bf16.msra.mxu0 0
        %969 = vmatpush.bf16.msra.mxu0 0
        %970 = vmatpush.bf16.msra.mxu0 0
        %971 = vmatpush.bf16.msra.mxu0 0
        %972 = vmatpush.bf16.msra.mxu0 %v379
        %973 = vmatmul.bf16.gmra.mxu0 %v950
        %v974 = vpop.f32.mrf.mxu0
        %v975 = vadd.f32 %v933, %v974
        %v976 = vpop.f32.mrf.mxu0
        %977 = vdwg.mxu0
        %978 = vmatpush.bf16.msra.mxu0 0
        %979 = vmatpush.bf16.msra.mxu0 0
        %980 = vmatpush.bf16.msra.mxu0 0
        %981 = vmatpush.bf16.msra.mxu0 0
        %982 = vmatpush.bf16.msra.mxu0 0
        %983 = vmatpush.bf16.msra.mxu0 0
        %984 = vmatpush.bf16.msra.mxu0 0
        %985 = vmatpush.bf16.msra.mxu0 %v382
        %986 = vmatmul.bf16.gmra.mxu0 %v950
        %v987 = vpop.f32.mrf.mxu0
        %v988 = vadd.f32 %v946, %v987
        %v989 = vpop.f32.mrf.mxu0
        %990 = vdwg.mxu0
        %s991 = scalar_lea.vmem %s1, 56
        %v992 = vld [vmem:[%s991] sm:$0xf]
        %v994 = vsel %vm192, %v992, 0
        %996 = vmatpush.bf16.msra.mxu0 0
        %997 = vmatpush.bf16.msra.mxu0 0
        %998 = vmatpush.bf16.msra.mxu0 0
        %999 = vmatpush.bf16.msra.mxu0 0
        %1000 = vmatpush.bf16.msra.mxu0 0
        %1001 = vmatpush.bf16.msra.mxu0 0
        %1002 = vmatpush.bf16.msra.mxu0 0
        %1003 = vmatpush.bf16.msra.mxu0 %v839
        %1004 = vmatmul.bf16.gmra.mxu0 %v994
        %v1005 = vpop.f32.mrf.mxu0
        %v1006 = vadd.f32 0.0, %v1005
        %v1007 = vpop.f32.mrf.mxu0
        %1008 = vdwg.mxu0
        %1009 = vmatpush.bf16.msra.mxu0 0
        %1010 = vmatpush.bf16.msra.mxu0 0
        %1011 = vmatpush.bf16.msra.mxu0 0
        %1012 = vmatpush.bf16.msra.mxu0 0
        %1013 = vmatpush.bf16.msra.mxu0 0
        %1014 = vmatpush.bf16.msra.mxu0 0
        %1015 = vmatpush.bf16.msra.mxu0 0
        %1016 = vmatpush.bf16.msra.mxu0 %v842
        %1017 = vmatmul.bf16.gmra.mxu0 %v994
        %v1018 = vpop.f32.mrf.mxu0
        %v1019 = vadd.f32 0.0, %v1018
        %v1020 = vpop.f32.mrf.mxu0
        %1021 = vdwg.mxu0
        %1022 = vmatpush.bf16.msra.mxu0 0
        %1023 = vmatpush.bf16.msra.mxu0 0
        %1024 = vmatpush.bf16.msra.mxu0 0
        %1025 = vmatpush.bf16.msra.mxu0 0
        %1026 = vmatpush.bf16.msra.mxu0 0
        %1027 = vmatpush.bf16.msra.mxu0 0
        %1028 = vmatpush.bf16.msra.mxu0 0
        %1029 = vmatpush.bf16.msra.mxu0 %v845
        %1030 = vmatmul.bf16.gmra.mxu0 %v994
        %v1031 = vpop.f32.mrf.mxu0
        %v1032 = vadd.f32 0.0, %v1031
        %v1033 = vpop.f32.mrf.mxu0
        %1034 = vdwg.mxu0
        %v1035 = vadd.f32 %v962, %v1006
        %v1036 = vadd.f32 %v975, %v1019
        %v1037 = vadd.f32 %v988, %v1032
        %s1038 = scalar_lea.vmem %s1, 60
        %v1039 = vld [vmem:[%s1038] sm:$0xf]
        %1040 = vrot.lane.b32.xlu0 %v180, 90
        %v1041 = vpop.permute.xlu0 %1040
        %1042 = vrot.lane.b32.xlu0 %v181, 90
        %v1043 = vpop.permute.xlu0 %1042
        %1044 = vrot.lane.b32.xlu0 %v182, 90
        %v1045 = vpop.permute.xlu0 %1044
        %vm1046 = vcmask 736256
        %v1047 = vsel %vm1046, %v1041, %v1043
        %v1048 = vsel %vm1046, %v1043, %v1045
        %v1050 = vsel %vm192, %v1039, 0
        %v1053 = vsel %vm196, %v1047, 0
        %v1056 = vsel %vm196, %v1048, 0
        %v1059 = vsel %vm196, %v1045, 0
        %1061 = vmatpush.bf16.msra.mxu0 0
        %1062 = vmatpush.bf16.msra.mxu0 0
        %1063 = vmatpush.bf16.msra.mxu0 0
        %1064 = vmatpush.bf16.msra.mxu0 0
        %1065 = vmatpush.bf16.msra.mxu0 0
        %1066 = vmatpush.bf16.msra.mxu0 0
        %1067 = vmatpush.bf16.msra.mxu0 0
        %1068 = vmatpush.bf16.msra.mxu0 %v1053
        %1069 = vmatmul.bf16.gmra.mxu0 %v1050
        %v1070 = vpop.f32.mrf.mxu0
        %v1071 = vadd.f32 0.0, %v1070
        %v1072 = vpop.f32.mrf.mxu0
        %1073 = vdwg.mxu0
        %1074 = vmatpush.bf16.msra.mxu0 0
        %1075 = vmatpush.bf16.msra.mxu0 0
        %1076 = vmatpush.bf16.msra.mxu0 0
        %1077 = vmatpush.bf16.msra.mxu0 0
        %1078 = vmatpush.bf16.msra.mxu0 0
        %1079 = vmatpush.bf16.msra.mxu0 0
        %1080 = vmatpush.bf16.msra.mxu0 0
        %1081 = vmatpush.bf16.msra.mxu0 %v1056
        %1082 = vmatmul.bf16.gmra.mxu0 %v1050
        %v1083 = vpop.f32.mrf.mxu0
        %v1084 = vadd.f32 0.0, %v1083
        %v1085 = vpop.f32.mrf.mxu0
        %1086 = vdwg.mxu0
        %1087 = vmatpush.bf16.msra.mxu0 0
        %1088 = vmatpush.bf16.msra.mxu0 0
        %1089 = vmatpush.bf16.msra.mxu0 0
        %1090 = vmatpush.bf16.msra.mxu0 0
        %1091 = vmatpush.bf16.msra.mxu0 0
        %1092 = vmatpush.bf16.msra.mxu0 0
        %1093 = vmatpush.bf16.msra.mxu0 0
        %1094 = vmatpush.bf16.msra.mxu0 %v1059
        %1095 = vmatmul.bf16.gmra.mxu0 %v1050
        %v1096 = vpop.f32.mrf.mxu0
        %v1097 = vadd.f32 0.0, %v1096
        %v1098 = vpop.f32.mrf.mxu0
        %1099 = vdwg.mxu0
        %v1100 = vadd.f32 %v1035, %v1071
        %v1101 = vadd.f32 %v1036, %v1084
        %v1102 = vadd.f32 %v1037, %v1097
        %s1103 = scalar_lea.vmem %s2, 24
        %v1104 = vld [vmem:[%s1103] sm:$0xff]
        %1106 = vset.pattern.permute.xlu0 0
        %1107 = vperm.xlu0 %1106, %v1104
        %v1108 = vpop.permute.xlu0 %1107
        %v1110 = vadd.f32 %v1100, %v1108
        %v1111 = vadd.f32 %v1101, %v1108
        %v1112 = vadd.f32 %v1102, %v1108
        %s1113 = scalar_lea.vmem %s163, 72 [#allocation2]
        %1114 = vst [vmem:[%s1113] sm:$0xff] %v1110
        %1115 = vst [vmem:[%s1113 + $0x8] sm:$0xff] %v1111
        %1116 = vst.msk [vmem:[%s1113 + $0x10] sm:$0xff] %vm437, %v1112
        %s1117 = sand.u32 %s93, 1
        %s1118 = scalar_lea.sflag [#allocation3], %s1117
        %s1119 = sand.u32 %s93, 1
        %s1120 = smul.addr %s1119, 96
        %s1121 = scalar_lea.vmem [#allocation2], %s1120
        // Predicated region
        $region33: #{tpu_custom_call.1} parent=31 // pred_check
          %p1122 = pneg %p103
        $region34: #{tpu_custom_call.1} parent=31 // pred_check_branch
          %1124 = sbr.rel (%p1122) target = $region36
        $region35: #{tpu_custom_call.1} parent=31 // pred_region
          %1126 = vsyncadd %s1118, 0
          %s1127 = smul.addr %s17, 12
          %s1128 = smul.addr %s1127, 8
          %s1129 = scalar_lea.hbm %s3, %s1128
          %s1130 = sshll.u32 %s1121, 4
          %s1131 = int_to_ptr.vmem [resolvable:$true] %s1130
          %s1132 = sshll.u32 %s1129, 4
          %s1133 = int_to_ptr.hbm [resolvable:$true] %s1132
          %1138 = dma.vmem_to_hbm [thread:$0]  %s1131, 1536, %s1133, %s1118, 384, 384, 24
        $region36: #{tpu_custom_call.1} parent=31 // pred_fallthru
          _
      $region32: #{tpu_custom_call.1} parent=5 // pred_fallthru
        _
      %p1139 = scmp.le.s32.totalorder 2, %s12
      // Predicated region
      $region37: #{tpu_custom_call.1} parent=5 // pred_check
        %p1140 = pneg %p1139
      $region38: #{tpu_custom_call.1} parent=5 // pred_check_branch
        %1142 = sbr.rel (%p1140) target = $region40
      $region39: #{tpu_custom_call.1} parent=5 // pred_region
        %s1143 = ssub.s32 %s12, 2
        // Predicated region
        $region41: #{tpu_custom_call.1} parent=39 // pred_check
          %p1144 = pneg %p109
        $region42: #{tpu_custom_call.1} parent=39 // pred_check_branch
          %1146 = sbr.rel (%p1144) target = $region44
        $region43: #{tpu_custom_call.1} parent=39 // pred_region
          %s1147 = sand.u32 %s94, 1
          %s1148 = scalar_lea.sflag [#allocation3], %s1147
          %s1149 = sand.u32 %s94, 1
          %s1150 = smul.addr %s1149, 96
          %s1151 = scalar_lea.vmem [#allocation2], %s1150
          %1153 = dma.done %s1148, 1536
        $region44: #{tpu_custom_call.1} parent=39 // pred_fallthru
          _
      $region40: #{tpu_custom_call.1} parent=5 // pred_fallthru
        _
    $region6: #{tpu_custom_call.1} parent=1 // loop_footer
      %s16 = sadd.s32 1, %s12
    $region7: #{tpu_custom_call.1} parent=1 // loop_footer_branch
      %11 = sbr.rel target = $region3
    $region8: #{tpu_custom_call.1} parent=1 // loop_exit
      _
    %1154 = vsyncpa [#allocation3], 1
    %s1155 = scalar_lea.sflag [#allocation3], 1
    %1156 = vsyncpa %s1155, 1

</llo_original>
